<compile_context>
chip_gen: v5e
topology: v5e:2x2
jax: 0.10.0
libtpu: 0.0.40
codegen_flags: <defaults>
</compile_context>

<pallas_src>
import jax
import jax.numpy as jnp
import numpy as np
from jax.experimental import pallas as pl
from jax.experimental.pallas import tpu as pltpu

# ---- small, module-consistent shapes ------------------------------------
B = 2          # batch
S = 16         # sequence length
H = 128        # hidden size (stands in for 768)
MAXLEN = 32    # position-embedding table size (stands in for 256)
P = 4          # predicate_num
P2 = P * 2
LANE = 128     # lane-dense output width (TPU vreg lane count)
SUB_LO = 0     # sub-logits live in lanes [0, 2)
OBJ_LO = 8     # obj-logits live in lanes [8, 8+P2)
LN_EPS = 1e-12


def _re_head_kernel(sub_ids_ref,                  # SMEM (B, 2) int32 (scalar prefetch)
                    out_ref,                      # VMEM (B*S, H) f32
                    pos_emb_ref,                  # VMEM (MAXLEN, H) f32
                    w_sub_ref,                    # (H, LANE) bf16, cols [0,2) live
                    w_lin_ref,                    # (H, H)   bf16, LN affine folded in
                    b_lin_ref,                    # (1, H)   f32,  LN affine folded in
                    w_obj_ref,                    # (H, LANE) bf16, cols [8,16) live
                    b_comb_ref,                   # (1, LANE) f32, b_sub|b_obj packed
                    logits_ref):                  # out VMEM (B*S, LANE) f32
    out = out_ref[...]                            # (B*S, H) f32
    out_bf = out.astype(jnp.bfloat16)

    # ---- logits_sub = sub_output(out): lanes [0,2) of the packed slab -----
    logits_sub = jnp.dot(out_bf, w_sub_ref[...],
                         preferred_element_type=jnp.float32)      # (BS, LANE)

    # ---- gather position embeddings / token states at sub_ids -------------
    # B == 2: tiny unrolled loop building one (1,H) bias row per batch, then
    # sublane-broadcast each row to (S,H) and add the whole slab in one pass.
    bias_blocks = []
    for b in range(B):
        s_id = sub_ids_ref[b, 0]
        e_id = sub_ids_ref[b, 1]
        row = (pos_emb_ref[pl.ds(s_id, 1), :]
               + pos_emb_ref[pl.ds(e_id, 1), :]
               + out_ref[pl.ds(b * S + s_id, 1), :]
               + out_ref[pl.ds(b * S + e_id, 1), :])              # (1, H)
        bias_blocks.append(jnp.broadcast_to(row, (S, H)))          # (S, H)
    out1 = out + jnp.concatenate(bias_blocks, axis=0)              # (BS, H)

    # ---- BertLayerNorm stats (affine folded into w_lin'/b_lin') ------------
    mean = jnp.mean(out1, axis=-1, keepdims=True)
    centered = out1 - mean
    var = jnp.mean(centered * centered, axis=-1, keepdims=True)
    x_norm = centered * jax.lax.rsqrt(var + LN_EPS)                # rsqrt -> EUP

    # dropout(p=0.5) -> identity in eval mode

    # ---- relu(linear(layernorm-affine(x_norm))) ----------------------------
    hidden = jnp.dot(x_norm.astype(jnp.bfloat16), w_lin_ref[...],
                     preferred_element_type=jnp.float32) + b_lin_ref[...]
    hidden = jnp.maximum(hidden, 0.0)

    # dropout(p=0.4) -> identity in eval mode

    # ---- logits_obj in lanes [8,16); single packed lane-dense store --------
    logits_obj = jnp.dot(hidden.astype(jnp.bfloat16), w_obj_ref[...],
                         preferred_element_type=jnp.float32)       # (BS, LANE)

    logits_ref[...] = logits_sub + logits_obj + b_comb_ref[...]


def prepare_params(params):
    """One-time param prep (pad to lane-dense slabs, fold LN affine, cast bf16).

    Run once outside the per-call jit path so padded weights are not
    re-materialized in HBM on every forward call.
    """
    (pos_emb, w_sub, b_sub, ln_w, ln_b, w_lin, b_lin, w_obj, b_obj) = params

    w_sub_p = (jnp.zeros((H, LANE), jnp.float32)
               .at[:, SUB_LO:SUB_LO + 2].set(w_sub)).astype(jnp.bfloat16)
    w_obj_p = (jnp.zeros((H, LANE), jnp.float32)
               .at[:, OBJ_LO:OBJ_LO + P2].set(w_obj)).astype(jnp.bfloat16)
    b_comb = (jnp.zeros((1, LANE), jnp.float32)
              .at[:, SUB_LO:SUB_LO + 2].set(b_sub)
              .at[:, OBJ_LO:OBJ_LO + P2].set(b_obj))

    # Fold LayerNorm affine into the linear layer (exact; dropout is identity
    # and ReLU follows the linear):  relu((g*x+b) @ W + c)
    #                              = relu(x @ (diag(g) @ W) + (b @ W + c))
    w_lin_f = (ln_w[0][:, None] * w_lin).astype(jnp.bfloat16)     # (H, H) bf16
    b_lin_f = ln_b @ w_lin + b_lin                                # (1, H) f32

    return (pos_emb, w_sub_p, w_lin_f, b_lin_f, w_obj_p, b_comb)


@jax.jit
def re_model_head(out, sub_ids, prepared):
    """Pallas implementation of REModel.forward past the BERT encoder.

    out      : (B, S, H) float32  -- BERT encoder output
    sub_ids  : (B, 2)    int32    -- subject start/end positions
    prepared : output of prepare_params(...)
    returns (logits_sub (B,S,2), obj_preds (B,S,P,2))
    """
    (pos_emb, w_sub_p, w_lin_f, b_lin_f, w_obj_p, b_comb) = prepared

    BS = B * S
    out_flat = out.reshape(BS, H)

    grid_spec = pltpu.PrefetchScalarGridSpec(
        num_scalar_prefetch=1,
        grid=(1,),                                            # whole batch, one step
        in_specs=[
            pl.BlockSpec((BS, H), lambda i, sub: (0, 0)),     # out (flattened)
            pl.BlockSpec((MAXLEN, H), lambda i, sub: (0, 0)),  # pos_emb
            pl.BlockSpec((H, LANE), lambda i, sub: (0, 0)),   # w_sub (bf16, padded)
            pl.BlockSpec((H, H), lambda i, sub: (0, 0)),      # w_lin' (bf16, LN folded)
            pl.BlockSpec((1, H), lambda i, sub: (0, 0)),      # b_lin' (f32)
            pl.BlockSpec((H, LANE), lambda i, sub: (0, 0)),   # w_obj (bf16, padded)
            pl.BlockSpec((1, LANE), lambda i, sub: (0, 0)),   # b_comb (f32, packed)
        ],
        out_specs=pl.BlockSpec((BS, LANE), lambda i, sub: (0, 0)),
    )

    slab = pl.pallas_call(
        _re_head_kernel,
        grid_spec=grid_spec,
        out_shape=jax.ShapeDtypeStruct((BS, LANE), jnp.float32),
        compiler_params=pltpu.CompilerParams(
            dimension_semantics=("arbitrary",)),
    )(sub_ids, out_flat, pos_emb, w_sub_p, w_lin_f, b_lin_f, w_obj_p, b_comb)

    logits_sub = slab[:, SUB_LO:SUB_LO + 2].reshape(B, S, 2)
    obj_preds = slab[:, OBJ_LO:OBJ_LO + P2].reshape(B, S, P, 2)
    return logits_sub, obj_preds


def _reference(out, sub_ids, params):
    """Pure-JAX f32 reference mirroring the PyTorch forward (eval mode)."""
    (pos_emb, w_sub, b_sub, ln_w, ln_b, w_lin, b_lin, w_obj, b_obj) = params
    logits_sub = out @ w_sub + b_sub[0]

    start_emb = pos_emb[sub_ids[:, :1]]                   # (B, 1, H)
    end_emb = pos_emb[sub_ids[:, 1:]]                     # (B, 1, H)
    start_out = jnp.take_along_axis(out, sub_ids[:, :1, None], axis=1)
    end_out = jnp.take_along_axis(out, sub_ids[:, 1:, None], axis=1)

    out1 = out + start_emb + start_out + end_emb + end_out
    mean = out1.mean(-1, keepdims=True)
    var = ((out1 - mean) ** 2).mean(-1, keepdims=True)
    out1 = ln_w[0] * ((out1 - mean) / jnp.sqrt(var + LN_EPS)) + ln_b[0]
    out1 = jnp.maximum(out1 @ w_lin + b_lin[0], 0.0)
    logits_obj = out1 @ w_obj + b_obj[0]
    return logits_sub, logits_obj.reshape(B, S, P, 2)


def _init_params(key):
    ks = jax.random.split(key, 6)
    pos_emb = jax.random.normal(ks[0], (MAXLEN, H), jnp.float32) * 0.02
    w_sub = jax.random.normal(ks[1], (H, 2), jnp.float32) * 0.02
    b_sub = jnp.zeros((1, 2), jnp.float32)
    ln_w = jnp.ones((1, H), jnp.float32)
    ln_b = jnp.zeros((1, H), jnp.float32)
    w_lin = jax.random.normal(ks[2], (H, H), jnp.float32) * 0.02
    b_lin = jax.random.normal(ks[3], (1, H), jnp.float32) * 0.02
    w_obj = jax.random.normal(ks[4], (H, P2), jnp.float32) * 0.02
    b_obj = jax.random.normal(ks[5], (1, P2), jnp.float32) * 0.02
    return (pos_emb, w_sub, b_sub, ln_w, ln_b, w_lin, b_lin, w_obj, b_obj)


if __name__ == "__main__":
    key = jax.random.PRNGKey(0)
    k_out, k_ids, k_par = jax.random.split(key, 3)

    # stand-in for the BERT encoder output (see TODO(synk) above)
    bert_out = jax.random.normal(k_out, (B, S, H), jnp.float32)
    sub_ids = jax.random.randint(k_ids, (B, 2), 0, S, dtype=jnp.int32)
    params = _init_params(k_par)

    prepared = prepare_params(params)          # one-time, outside the jit path
    prepared = jax.block_until_ready(prepared)

    logits_sub, obj_preds = re_model_head(bert_out, sub_ids, prepared)
    jax.block_until_ready((logits_sub, obj_preds))

    ref_sub, ref_obj = _reference(bert_out, sub_ids, params)
    # bf16 MXU operands (f32 accumulation) -> loosened tolerances vs f32 ref.
    np.testing.assert_allclose(np.asarray(logits_sub), np.asarray(ref_sub),
                               rtol=2e-2, atol=5e-3)
    np.testing.assert_allclose(np.asarray(obj_preds), np.asarray(ref_obj),
                               rtol=2e-2, atol=5e-3)

    assert logits_sub.shape == (B, S, 2)
    assert obj_preds.shape == (B, S, P, 2)
    print("KERNEL_OK")
</pallas_src>

<mosaic_0001>
module attributes {stable_mosaic.version = 11 : i64} {
  func.func @_re_head_kernel(%arg0: i32, %arg1: memref<2x2xi32, #tpu.memory_space<smem>>, %arg2: memref<32x128xf32, #tpu.memory_space<vmem>>, %arg3: memref<32x128xf32, #tpu.memory_space<vmem>>, %arg4: memref<128x128xbf16, #tpu.memory_space<vmem>>, %arg5: memref<128x128xbf16, #tpu.memory_space<vmem>>, %arg6: memref<1x128xf32, #tpu.memory_space<vmem>>, %arg7: memref<128x128xbf16, #tpu.memory_space<vmem>>, %arg8: memref<1x128xf32, #tpu.memory_space<vmem>>, %arg9: memref<32x128xf32, #tpu.memory_space<vmem>>) attributes {dimension_semantics = [#tpu.dimension_semantics<arbitrary>], iteration_bounds = array<i64: 1>, scalar_prefetch = 1 : i64, scratch_operands = 0 : i64, tpu.core_type = #tpu.core_type<tc>, window_params = [{pipeline_mode = #tpu.pipeline_mode<synchronous>, transform_indices = @transform_0, window_bounds = array<i64: 32, 128>}, {pipeline_mode = #tpu.pipeline_mode<synchronous>, transform_indices = @transform_1, window_bounds = array<i64: 32, 128>}, {pipeline_mode = #tpu.pipeline_mode<synchronous>, transform_indices = @transform_2, window_bounds = array<i64: 128, 128>}, {pipeline_mode = #tpu.pipeline_mode<synchronous>, transform_indices = @transform_3, window_bounds = array<i64: 128, 128>}, {pipeline_mode = #tpu.pipeline_mode<synchronous>, transform_indices = @transform_4, window_bounds = array<i64: 1, 128>}, {pipeline_mode = #tpu.pipeline_mode<synchronous>, transform_indices = @transform_5, window_bounds = array<i64: 128, 128>}, {pipeline_mode = #tpu.pipeline_mode<synchronous>, transform_indices = @transform_6, window_bounds = array<i64: 1, 128>}, {pipeline_mode = #tpu.pipeline_mode<synchronous>, transform_indices = @transform_7, window_bounds = array<i64: 32, 128>}]} {
    %c0 = arith.constant 0 : index
    %c0_0 = arith.constant 0 : index
    %0 = vector.load %arg2[%c0, %c0_0] : memref<32x128xf32, #tpu.memory_space<vmem>>, vector<32x128xf32>
    %1 = arith.truncf %0 : vector<32x128xf32> to vector<32x128xbf16>
    %c0_1 = arith.constant 0 : index
    %c0_2 = arith.constant 0 : index
    %2 = vector.load %arg4[%c0_1, %c0_2] : memref<128x128xbf16, #tpu.memory_space<vmem>>, vector<128x128xbf16>
    %cst = arith.constant dense<0.000000e+00> : vector<32x128xf32>
    %3 = tpu.matmul %1, %2, %cst {dimension_numbers = #tpu.dot_dimension_numbers<[1], [0], [0], [1], [0, 0, 1, 1], [], []>} : vector<32x128xbf16>, vector<128x128xbf16>, vector<32x128xf32> -> vector<32x128xf32>
    %c0_3 = arith.constant 0 : index
    %c0_4 = arith.constant 0 : index
    %4 = memref.load %arg1[%c0_3, %c0_4] : memref<2x2xi32, #tpu.memory_space<smem>>
    %c0_5 = arith.constant 0 : index
    %c1 = arith.constant 1 : index
    %5 = memref.load %arg1[%c0_5, %c1] : memref<2x2xi32, #tpu.memory_space<smem>>
    %6 = arith.index_cast %4 : i32 to index
    %c0_6 = arith.constant 0 : index
    %7 = vector.load %arg3[%6, %c0_6] : memref<32x128xf32, #tpu.memory_space<vmem>>, vector<1x128xf32>
    %8 = arith.index_cast %5 : i32 to index
    %c0_7 = arith.constant 0 : index
    %9 = vector.load %arg3[%8, %c0_7] : memref<32x128xf32, #tpu.memory_space<vmem>>, vector<1x128xf32>
    %10 = arith.addf %7, %9 : vector<1x128xf32>
    %c0_i32 = arith.constant 0 : i32
    %11 = arith.addi %c0_i32, %4 : i32
    %12 = arith.index_cast %11 : i32 to index
    %c0_8 = arith.constant 0 : index
    %13 = vector.load %arg2[%12, %c0_8] : memref<32x128xf32, #tpu.memory_space<vmem>>, vector<1x128xf32>
    %14 = arith.addf %10, %13 : vector<1x128xf32>
    %c0_i32_9 = arith.constant 0 : i32
    %15 = arith.addi %c0_i32_9, %5 : i32
    %16 = arith.index_cast %15 : i32 to index
    %c0_10 = arith.constant 0 : index
    %17 = vector.load %arg2[%16, %c0_10] : memref<32x128xf32, #tpu.memory_space<vmem>>, vector<1x128xf32>
    %18 = arith.addf %14, %17 : vector<1x128xf32>
    %19 = vector.shape_cast %18 : vector<1x128xf32> to vector<1x128xf32>
    %20 = vector.broadcast %19 : vector<1x128xf32> to vector<16x128xf32>
    %c1_11 = arith.constant 1 : index
    %c0_12 = arith.constant 0 : index
    %21 = memref.load %arg1[%c1_11, %c0_12] : memref<2x2xi32, #tpu.memory_space<smem>>
    %c1_13 = arith.constant 1 : index
    %c1_14 = arith.constant 1 : index
    %22 = memref.load %arg1[%c1_13, %c1_14] : memref<2x2xi32, #tpu.memory_space<smem>>
    %23 = arith.index_cast %21 : i32 to index
    %c0_15 = arith.constant 0 : index
    %24 = vector.load %arg3[%23, %c0_15] : memref<32x128xf32, #tpu.memory_space<vmem>>, vector<1x128xf32>
    %25 = arith.index_cast %22 : i32 to index
    %c0_16 = arith.constant 0 : index
    %26 = vector.load %arg3[%25, %c0_16] : memref<32x128xf32, #tpu.memory_space<vmem>>, vector<1x128xf32>
    %27 = arith.addf %24, %26 : vector<1x128xf32>
    %c16_i32 = arith.constant 16 : i32
    %28 = arith.addi %c16_i32, %21 : i32
    %29 = arith.index_cast %28 : i32 to index
    %c0_17 = arith.constant 0 : index
    %30 = vector.load %arg2[%29, %c0_17] : memref<32x128xf32, #tpu.memory_space<vmem>>, vector<1x128xf32>
    %31 = arith.addf %27, %30 : vector<1x128xf32>
    %c16_i32_18 = arith.constant 16 : i32
    %32 = arith.addi %c16_i32_18, %22 : i32
    %33 = arith.index_cast %32 : i32 to index
    %c0_19 = arith.constant 0 : index
    %34 = vector.load %arg2[%33, %c0_19] : memref<32x128xf32, #tpu.memory_space<vmem>>, vector<1x128xf32>
    %35 = arith.addf %31, %34 : vector<1x128xf32>
    %36 = vector.shape_cast %35 : vector<1x128xf32> to vector<1x128xf32>
    %37 = vector.broadcast %36 : vector<1x128xf32> to vector<16x128xf32>
    %38 = tpu.concatenate %20, %37 in 0 : vector<16x128xf32>, vector<16x128xf32> -> vector<32x128xf32>
    %39 = arith.addf %0, %38 : vector<32x128xf32>
    %cst_20 = arith.constant dense<0.000000e+00> : vector<32xf32>
    %40 = vector.multi_reduction <add>, %39, %cst_20 [1] : vector<32x128xf32> to vector<32xf32>
    %41 = vector.shape_cast %40 : vector<32xf32> to vector<32x1xf32>
    %cst_21 = arith.constant 1.280000e+02 : f32
    %42 = vector.broadcast %cst_21 : f32 to vector<32x1xf32>
    %43 = arith.divf %41, %42 : vector<32x1xf32>
    %44 = vector.broadcast %43 : vector<32x1xf32> to vector<32x128xf32>
    %45 = arith.subf %39, %44 : vector<32x128xf32>
    %46 = arith.mulf %45, %45 : vector<32x128xf32>
    %cst_22 = arith.constant dense<0.000000e+00> : vector<32xf32>
    %47 = vector.multi_reduction <add>, %46, %cst_22 [1] : vector<32x128xf32> to vector<32xf32>
    %48 = vector.shape_cast %47 : vector<32xf32> to vector<32x1xf32>
    %cst_23 = arith.constant 1.280000e+02 : f32
    %49 = vector.broadcast %cst_23 : f32 to vector<32x1xf32>
    %50 = arith.divf %48, %49 : vector<32x1xf32>
    %cst_24 = arith.constant 9.99999996E-13 : f32
    %51 = vector.broadcast %cst_24 : f32 to vector<32x1xf32>
    %52 = arith.addf %50, %51 : vector<32x1xf32>
    %53 = math.rsqrt %52 : vector<32x1xf32>
    %54 = vector.broadcast %53 : vector<32x1xf32> to vector<32x128xf32>
    %55 = arith.mulf %45, %54 : vector<32x128xf32>
    %56 = arith.truncf %55 : vector<32x128xf32> to vector<32x128xbf16>
    %c0_25 = arith.constant 0 : index
    %c0_26 = arith.constant 0 : index
    %57 = vector.load %arg5[%c0_25, %c0_26] : memref<128x128xbf16, #tpu.memory_space<vmem>>, vector<128x128xbf16>
    %cst_27 = arith.constant dense<0.000000e+00> : vector<32x128xf32>
    %58 = tpu.matmul %56, %57, %cst_27 {dimension_numbers = #tpu.dot_dimension_numbers<[1], [0], [0], [1], [0, 0, 1, 1], [], []>} : vector<32x128xbf16>, vector<128x128xbf16>, vector<32x128xf32> -> vector<32x128xf32>
    %c0_28 = arith.constant 0 : index
    %c0_29 = arith.constant 0 : index
    %59 = vector.load %arg6[%c0_28, %c0_29] : memref<1x128xf32, #tpu.memory_space<vmem>>, vector<1x128xf32>
    %60 = vector.broadcast %59 : vector<1x128xf32> to vector<32x128xf32>
    %61 = arith.addf %58, %60 : vector<32x128xf32>
    %cst_30 = arith.constant 0.000000e+00 : f32
    %62 = vector.broadcast %cst_30 : f32 to vector<32x128xf32>
    %63 = arith.maximumf %61, %62 : vector<32x128xf32>
    %64 = arith.truncf %63 : vector<32x128xf32> to vector<32x128xbf16>
    %c0_31 = arith.constant 0 : index
    %c0_32 = arith.constant 0 : index
    %65 = vector.load %arg7[%c0_31, %c0_32] : memref<128x128xbf16, #tpu.memory_space<vmem>>, vector<128x128xbf16>
    %cst_33 = arith.constant dense<0.000000e+00> : vector<32x128xf32>
    %66 = tpu.matmul %64, %65, %cst_33 {dimension_numbers = #tpu.dot_dimension_numbers<[1], [0], [0], [1], [0, 0, 1, 1], [], []>} : vector<32x128xbf16>, vector<128x128xbf16>, vector<32x128xf32> -> vector<32x128xf32>
    %67 = arith.addf %3, %66 : vector<32x128xf32>
    %c0_34 = arith.constant 0 : index
    %c0_35 = arith.constant 0 : index
    %68 = vector.load %arg8[%c0_34, %c0_35] : memref<1x128xf32, #tpu.memory_space<vmem>>, vector<1x128xf32>
    %69 = vector.broadcast %68 : vector<1x128xf32> to vector<32x128xf32>
    %70 = arith.addf %67, %69 : vector<32x128xf32>
    %c0_36 = arith.constant 0 : index
    %c0_37 = arith.constant 0 : index
    %71 = vector.load %arg9[%c0_36, %c0_37] : memref<32x128xf32, #tpu.memory_space<vmem>>, vector<32x128xf32>
    tpu.vector_store %arg9[%c0_36, %c0_37], %70 {strides = array<i32>} : memref<32x128xf32, #tpu.memory_space<vmem>>, vector<32x128xf32>,
    return
  }
  func.func @transform_0(%arg0: i32, %arg1: memref<2x2xi32, #tpu.memory_space<smem>>) -> (i32, i32) {
    %c0_i32 = arith.constant 0 : i32
    %c0_i32_0 = arith.constant 0 : i32
    %c0_i32_1 = arith.constant 0 : i32
    return %c0_i32, %c0_i32_0 : i32, i32
  }
  func.func @transform_1(%arg0: i32, %arg1: memref<2x2xi32, #tpu.memory_space<smem>>) -> (i32, i32) {
    %c0_i32 = arith.constant 0 : i32
    %c0_i32_0 = arith.constant 0 : i32
    %c0_i32_1 = arith.constant 0 : i32
    return %c0_i32, %c0_i32_0 : i32, i32
  }
  func.func @transform_2(%arg0: i32, %arg1: memref<2x2xi32, #tpu.memory_space<smem>>) -> (i32, i32) {
    %c0_i32 = arith.constant 0 : i32
    %c0_i32_0 = arith.constant 0 : i32
    %c0_i32_1 = arith.constant 0 : i32
    return %c0_i32, %c0_i32_0 : i32, i32
  }
  func.func @transform_3(%arg0: i32, %arg1: memref<2x2xi32, #tpu.memory_space<smem>>) -> (i32, i32) {
    %c0_i32 = arith.constant 0 : i32
    %c0_i32_0 = arith.constant 0 : i32
    %c0_i32_1 = arith.constant 0 : i32
    return %c0_i32, %c0_i32_0 : i32, i32
  }
  func.func @transform_4(%arg0: i32, %arg1: memref<2x2xi32, #tpu.memory_space<smem>>) -> (i32, i32) {
    %c0_i32 = arith.constant 0 : i32
    %c0_i32_0 = arith.constant 0 : i32
    %c0_i32_1 = arith.constant 0 : i32
    return %c0_i32, %c0_i32_0 : i32, i32
  }
  func.func @transform_5(%arg0: i32, %arg1: memref<2x2xi32, #tpu.memory_space<smem>>) -> (i32, i32) {
    %c0_i32 = arith.constant 0 : i32
    %c0_i32_0 = arith.constant 0 : i32
    %c0_i32_1 = arith.constant 0 : i32
    return %c0_i32, %c0_i32_0 : i32, i32
  }
  func.func @transform_6(%arg0: i32, %arg1: memref<2x2xi32, #tpu.memory_space<smem>>) -> (i32, i32) {
    %c0_i32 = arith.constant 0 : i32
    %c0_i32_0 = arith.constant 0 : i32
    %c0_i32_1 = arith.constant 0 : i32
    return %c0_i32, %c0_i32_0 : i32, i32
  }
  func.func @transform_7(%arg0: i32, %arg1: memref<2x2xi32, #tpu.memory_space<smem>>) -> (i32, i32) {
    %c0_i32 = arith.constant 0 : i32
    %c0_i32_0 = arith.constant 0 : i32
    %c0_i32_1 = arith.constant 0 : i32
    return %c0_i32, %c0_i32_0 : i32, i32
  }
}

</mosaic_0001>

<llo_original>
// kernel: re_model_head.1
$region0: #{re_model_head.1}
  #allocation0 [shape = 'u32[]', space=smem, size = 0x4, offset = 0x4, fixed_abs, tag = 'smem constant byte address 0x4 - core index']
  #allocation1 [shape = 'u32[72,128]{1,0:T(1,128)}', space=vmem, size = 0x9000, scoped, tag = 'internal scratch']
  #allocation2 [shape = 's32[1]{0}', space=sflag, size = 0x4, scoped, tag = 'scoped memory for re_model_head.1']
  #allocation3 [shape = 'u8[1024]{0}', space=smem, size = 0x400, scoped, tag = 'prefetched SMEM operand 0']
  %s0 = inlined_call_operand.hbm [shape: s32[2,2], index: 0, kind: input, shape index: {}]
  %s1 = inlined_call_operand.hbm [shape: f32[32,128], index: 1, kind: input, shape index: {}]
  %s2 = inlined_call_operand.hbm [shape: f32[32,128], index: 2, kind: input, shape index: {}]
  %s3 = inlined_call_operand.hbm [shape: bf16[128,128], index: 3, kind: input, shape index: {}]
  %s4 = inlined_call_operand.hbm [shape: bf16[128,128], index: 4, kind: input, shape index: {}]
  %s5 = inlined_call_operand.vmem [shape: f32[1,128], index: 5, kind: input, shape index: {}]
  %s6 = inlined_call_operand.hbm [shape: bf16[128,128], index: 6, kind: input, shape index: {}]
  %s7 = inlined_call_operand.vmem [shape: f32[1,128], index: 7, kind: input, shape index: {}]
  %s8 = inlined_call_operand.vmem [shape: f32[32,128], index: 8, kind: output, shape index: {}]
  %s9 = sld [smem:[#allocation0]]
  $region58: #{re_model_head.1} parent=0
    _
  %s11 = ssub.s32 1, %s9
  %s12 = scalar_select 0, %s11, %s9
  %s14 = sshll.u32 %s0, 4
  %s15 = int_to_ptr.hbm [resolvable:$true] %s14
  %17 = dma.hbm_to_smem %s15, 32, [#allocation3], [#allocation2]
  %19 = dma.done [#allocation2], 32
  %20 = sfence
  $region1: #{re_model_head.1} parent=0
    #allocation4 [shape = 'u8[16384]{0}', space=vmem, size = 0x4000, scoped, tag = 'input window, operand 1, single buffered']
    #allocation5 [shape = 's32[1]{0}', space=sflag, size = 0x4, scoped, tag = 'scoped memory for re_model_head.1']
    #allocation6 [shape = 'u8[16384]{0}', space=vmem, size = 0x4000, scoped, tag = 'input window, operand 2, single buffered']
    #allocation7 [shape = 's32[1]{0}', space=sflag, size = 0x4, scoped, tag = 'scoped memory for re_model_head.1']
    #allocation8 [shape = 'u8[32768]{0}', space=vmem, size = 0x8000, scoped, tag = 'input window, operand 3, single buffered']
    #allocation9 [shape = 'u8[32768]{0}', space=vmem, size = 0x8000, scoped, tag = 'input window, operand 4, single buffered']
    #allocation10 [shape = 's32[1]{0}', space=sflag, size = 0x4, scoped, tag = 'scoped memory for re_model_head.1']
    #allocation11 [shape = 'u8[32768]{0}', space=vmem, size = 0x8000, scoped, tag = 'input window, operand 6, single buffered']
    %21 = vsyncpa [#allocation5], 0
    %22 = vsyncpa [#allocation7], 0
    %23 = vsyncpa [#allocation10], 0
    // Predicated region
    $region2: #{re_model_head.1} parent=1 // pred_check
      _
    $region3: #{re_model_head.1} parent=1 // pred_check_branch
      %25 = sbr.rel (0) target = $region5
    $region4: #{re_model_head.1} parent=1 // pred_region
      %27 = vsyncadd [#allocation5], 0
      %s28 = sshll.u32 %s1, 4
      %s29 = int_to_ptr.hbm [resolvable:$true] %s28
      %s30 = sshll.u32 [#allocation4], 4
      %s31 = int_to_ptr.vmem [resolvable:$true] %s30
      %36 = dma.hbm_to_vmem [thread:$0]  %s29, 512, %s31, [#allocation5], 128, 128, 8
    $region5: #{re_model_head.1} parent=1 // pred_fallthru
      _
    // Predicated region
    $region6: #{re_model_head.1} parent=1 // pred_check
      _
    $region7: #{re_model_head.1} parent=1 // pred_check_branch
      %38 = sbr.rel (0) target = $region9
    $region8: #{re_model_head.1} parent=1 // pred_region
      %40 = vsyncadd [#allocation7], 0
      %s41 = sshll.u32 %s2, 4
      %s42 = int_to_ptr.hbm [resolvable:$true] %s41
      %s43 = sshll.u32 [#allocation6], 4
      %s44 = int_to_ptr.vmem [resolvable:$true] %s43
      %49 = dma.hbm_to_vmem [thread:$0]  %s42, 512, %s44, [#allocation7], 128, 128, 8
    $region9: #{re_model_head.1} parent=1 // pred_fallthru
      _
    // Predicated region
    $region10: #{re_model_head.1} parent=1 // pred_check
      _
    $region11: #{re_model_head.1} parent=1 // pred_check_branch
      %51 = sbr.rel (0) target = $region13
    $region12: #{re_model_head.1} parent=1 // pred_region
      %53 = vsyncadd [#allocation7], 0
      %s54 = sshll.u32 %s3, 4
      %s55 = int_to_ptr.hbm [resolvable:$true] %s54
      %s56 = sshll.u32 [#allocation8], 4
      %s57 = int_to_ptr.vmem [resolvable:$true] %s56
      %62 = dma.hbm_to_vmem [thread:$0]  %s55, 1024, %s57, [#allocation7], 64, 64, 4
    $region13: #{re_model_head.1} parent=1 // pred_fallthru
      _
    // Predicated region
    $region14: #{re_model_head.1} parent=1 // pred_check
      _
    $region15: #{re_model_head.1} parent=1 // pred_check_branch
      %64 = sbr.rel (0) target = $region17
    $region16: #{re_model_head.1} parent=1 // pred_region
      %66 = vsyncadd [#allocation10], 0
      %s67 = sshll.u32 %s4, 4
      %s68 = int_to_ptr.hbm [resolvable:$true] %s67
      %s69 = sshll.u32 [#allocation9], 4
      %s70 = int_to_ptr.vmem [resolvable:$true] %s69
      %75 = dma.hbm_to_vmem [thread:$0]  %s68, 1024, %s70, [#allocation10], 64, 64, 4
    $region17: #{re_model_head.1} parent=1 // pred_fallthru
      _
    // Predicated region
    $region18: #{re_model_head.1} parent=1 // pred_check
      _
    $region19: #{re_model_head.1} parent=1 // pred_check_branch
      %77 = sbr.rel (0) target = $region21
    $region20: #{re_model_head.1} parent=1 // pred_region
      _
    $region21: #{re_model_head.1} parent=1 // pred_fallthru
      _
    // Predicated region
    $region22: #{re_model_head.1} parent=1 // pred_check
      _
    $region23: #{re_model_head.1} parent=1 // pred_check_branch
      %79 = sbr.rel (0) target = $region25
    $region24: #{re_model_head.1} parent=1 // pred_region
      %81 = vsyncadd [#allocation10], 0
      %s82 = sshll.u32 %s6, 4
      %s83 = int_to_ptr.hbm [resolvable:$true] %s82
      %s84 = sshll.u32 [#allocation11], 4
      %s85 = int_to_ptr.vmem [resolvable:$true] %s84
      %90 = dma.hbm_to_vmem [thread:$0]  %s83, 1024, %s85, [#allocation10], 64, 64, 4
    $region25: #{re_model_head.1} parent=1 // pred_fallthru
      _
    // Predicated region
    $region26: #{re_model_head.1} parent=1 // pred_check
      _
    $region27: #{re_model_head.1} parent=1 // pred_check_branch
      %92 = sbr.rel (0) target = $region29
    $region28: #{re_model_head.1} parent=1 // pred_region
      _
    $region29: #{re_model_head.1} parent=1 // pred_fallthru
      _
    // Predicated region
    $region30: #{re_model_head.1} parent=1 // pred_check
      _
    $region31: #{re_model_head.1} parent=1 // pred_check_branch
      %94 = sbr.rel (0) target = $region33
    $region32: #{re_model_head.1} parent=1 // pred_region
      %96 = dma.done [#allocation5], 512
    $region33: #{re_model_head.1} parent=1 // pred_fallthru
      _
    // Predicated region
    $region34: #{re_model_head.1} parent=1 // pred_check
      _
    $region35: #{re_model_head.1} parent=1 // pred_check_branch
      %98 = sbr.rel (0) target = $region37
    $region36: #{re_model_head.1} parent=1 // pred_region
      %100 = dma.done [#allocation7], 512
    $region37: #{re_model_head.1} parent=1 // pred_fallthru
      _
    // Predicated region
    $region38: #{re_model_head.1} parent=1 // pred_check
      _
    $region39: #{re_model_head.1} parent=1 // pred_check_branch
      %102 = sbr.rel (0) target = $region41
    $region40: #{re_model_head.1} parent=1 // pred_region
      %104 = dma.done [#allocation7], 1024
    $region41: #{re_model_head.1} parent=1 // pred_fallthru
      _
    // Predicated region
    $region42: #{re_model_head.1} parent=1 // pred_check
      _
    $region43: #{re_model_head.1} parent=1 // pred_check_branch
      %106 = sbr.rel (0) target = $region45
    $region44: #{re_model_head.1} parent=1 // pred_region
      %108 = dma.done [#allocation10], 1024
    $region45: #{re_model_head.1} parent=1 // pred_fallthru
      _
    // Predicated region
    $region46: #{re_model_head.1} parent=1 // pred_check
      _
    $region47: #{re_model_head.1} parent=1 // pred_check_branch
      %110 = sbr.rel (0) target = $region49
    $region48: #{re_model_head.1} parent=1 // pred_region
      %112 = dma.done [#allocation10], 1024
    $region49: #{re_model_head.1} parent=1 // pred_fallthru
      _
    %v113 = vld [vmem:[#allocation4] sm:$0xff]
    %v114 = vld [vmem:[#allocation4 + $0x8] sm:$0xff]
    %v115 = vld [vmem:[#allocation4 + $0x10] sm:$0xff]
    %v116 = vld [vmem:[#allocation4 + $0x18] sm:$0xff]
    %v117 = vpack.c.bf16 %v114, %v113
    %v118 = vpack.c.bf16 %v116, %v115
    %v119 = vld [vmem:[#allocation8] sm:$0xf]
    %v120 = vld [vmem:[#allocation8 + $0x4] sm:$0xf]
    %v121 = vld [vmem:[#allocation8 + $0x8] sm:$0xf]
    %v122 = vld [vmem:[#allocation8 + $0xc] sm:$0xf]
    %v123 = vld [vmem:[#allocation8 + $0x10] sm:$0xf]
    %v124 = vld [vmem:[#allocation8 + $0x14] sm:$0xf]
    %v125 = vld [vmem:[#allocation8 + $0x18] sm:$0xf]
    %v126 = vld [vmem:[#allocation8 + $0x1c] sm:$0xf]
    %v127 = vld [vmem:[#allocation8 + $0x20] sm:$0xf]
    %v128 = vld [vmem:[#allocation8 + $0x24] sm:$0xf]
    %v129 = vld [vmem:[#allocation8 + $0x28] sm:$0xf]
    %v130 = vld [vmem:[#allocation8 + $0x2c] sm:$0xf]
    %v131 = vld [vmem:[#allocation8 + $0x30] sm:$0xf]
    %v132 = vld [vmem:[#allocation8 + $0x34] sm:$0xf]
    %v133 = vld [vmem:[#allocation8 + $0x38] sm:$0xf]
    %v134 = vld [vmem:[#allocation8 + $0x3c] sm:$0xf]
    %s135 = sld [smem:[#allocation3]]
    %s136 = sld [smem:[#allocation3 + $0x1]]
    %s137 = scalar_lea.vmem [#allocation6], %s135
    %v138 = vld [vmem:[%s137] sm:$0x1]
    %s139 = scalar_lea.vmem [#allocation6], %s136
    %v140 = vld [vmem:[%s139] sm:$0x1]
    %v141 = vadd.f32 %v138, %v140
    %s142 = scalar_lea.vmem [#allocation4], %s135
    %v143 = vld [vmem:[%s142] sm:$0x1]
    %v144 = vadd.f32 %v141, %v143
    %s145 = scalar_lea.vmem [#allocation4], %s136
    %v146 = vld [vmem:[%s145] sm:$0x1]
    %v147 = vadd.f32 %v144, %v146
    %v148 = vperm.slane %v147, 0
    %s149 = sld [smem:[#allocation3 + $0x80]]
    %s150 = sld [smem:[#allocation3 + $0x81]]
    %s151 = scalar_lea.vmem [#allocation6], %s149
    %v152 = vld [vmem:[%s151] sm:$0x1]
    %s153 = scalar_lea.vmem [#allocation6], %s150
    %v154 = vld [vmem:[%s153] sm:$0x1]
    %v155 = vadd.f32 %v152, %v154
    %s156 = sadd.s32 %s149, 16
    %s157 = scalar_lea.vmem [#allocation4], %s156
    %v158 = vld [vmem:[%s157] sm:$0x1]
    %v159 = vadd.f32 %v155, %v158
    %s160 = sadd.s32 %s150, 16
    %s161 = scalar_lea.vmem [#allocation4], %s160
    %v162 = vld [vmem:[%s161] sm:$0x1]
    %v163 = vadd.f32 %v159, %v162
    %v164 = vperm.slane %v163, 0
    %v165 = vadd.f32 %v113, %v148
    %v166 = vadd.f32 %v114, %v148
    %v167 = vadd.f32 %v115, %v164
    %v168 = vadd.f32 %v116, %v164
    %169 = vadd.xlane.f32.xlu0 %v165
    %v170 = vpop.xlane.xlu0 %169
    %171 = vadd.xlane.f32.xlu0 %v166
    %v172 = vpop.xlane.xlu0 %171
    %173 = vadd.xlane.f32.xlu0 %v167
    %v174 = vpop.xlane.xlu0 %173
    %175 = vadd.xlane.f32.xlu0 %v168
    %v176 = vpop.xlane.xlu0 %175
    %v177 = vrcp.pop 128.0
    %v178 = vmul.f32 128.0, %v177
    %v179 = vsub.f32 1.0, %v178
    %v180 = vmul.f32 %v177, %v179
    %v181 = vadd.f32 %v177, %v180
    %vm182 = vweird.f32 %v177
    %v183 = vsel %vm182, %v177, %v181
    %v184 = vmul.f32 %v170, %v183
    %v185 = vmul.f32 %v172, %v183
    %v186 = vmul.f32 %v174, %v183
    %v187 = vmul.f32 %v176, %v183
    %v188 = vsub.f32 %v165, %v184
    %v189 = vsub.f32 %v166, %v185
    %v190 = vsub.f32 %v167, %v186
    %v191 = vsub.f32 %v168, %v187
    %v192 = vmul.f32 %v188, %v188
    %v193 = vmul.f32 %v189, %v189
    %v194 = vmul.f32 %v190, %v190
    %v195 = vmul.f32 %v191, %v191
    %196 = vadd.xlane.f32.xlu0 %v192
    %v197 = vpop.xlane.xlu0 %196
    %198 = vadd.xlane.f32.xlu0 %v193
    %v199 = vpop.xlane.xlu0 %198
    %200 = vadd.xlane.f32.xlu0 %v194
    %v201 = vpop.xlane.xlu0 %200
    %202 = vadd.xlane.f32.xlu0 %v195
    %v203 = vpop.xlane.xlu0 %202
    %v204 = vmul.f32 %v197, %v183
    %v205 = vmul.f32 %v199, %v183
    %v206 = vmul.f32 %v201, %v183
    %v207 = vmul.f32 %v203, %v183
    %v208 = vadd.f32 %v204, 1e-12
    %v209 = vadd.f32 %v205, 1e-12
    %v210 = vadd.f32 %v206, 1e-12
    %v211 = vadd.f32 %v207, 1e-12
    %v212 = vrsqrt.pop %v208
    %v213 = vmul.f32 %v212, %v208
    %v214 = vmul.f32 %v213, %v212
    %v215 = vmul.f32 0.5, %v214
    %v216 = vsub.f32 1.5, %v215
    %v217 = vmul.f32 %v212, %v216
    %vm218 = vweird.f32 %v208
    %vm219 = vweird.f32 %v212
    %vm220 = vmor %vm218, %vm219
    %v221 = vsel %vm220, %v212, %v217
    %v222 = vrsqrt.pop %v209
    %v223 = vmul.f32 %v222, %v209
    %v224 = vmul.f32 %v223, %v222
    %v225 = vmul.f32 0.5, %v224
    %v226 = vsub.f32 1.5, %v225
    %v227 = vmul.f32 %v222, %v226
    %vm228 = vweird.f32 %v209
    %vm229 = vweird.f32 %v222
    %vm230 = vmor %vm228, %vm229
    %v231 = vsel %vm230, %v222, %v227
    %v232 = vrsqrt.pop %v210
    %v233 = vmul.f32 %v232, %v210
    %v234 = vmul.f32 %v233, %v232
    %v235 = vmul.f32 0.5, %v234
    %v236 = vsub.f32 1.5, %v235
    %v237 = vmul.f32 %v232, %v236
    %vm238 = vweird.f32 %v210
    %vm239 = vweird.f32 %v232
    %vm240 = vmor %vm238, %vm239
    %v241 = vsel %vm240, %v232, %v237
    %v242 = vrsqrt.pop %v211
    %v243 = vmul.f32 %v242, %v211
    %v244 = vmul.f32 %v243, %v242
    %v245 = vmul.f32 0.5, %v244
    %v246 = vsub.f32 1.5, %v245
    %v247 = vmul.f32 %v242, %v246
    %vm248 = vweird.f32 %v211
    %vm249 = vweird.f32 %v242
    %vm250 = vmor %vm248, %vm249
    %v251 = vsel %vm250, %v242, %v247
    %v252 = vmul.f32 %v188, %v221
    %v253 = vmul.f32 %v189, %v231
    %v254 = vmul.f32 %v190, %v241
    %v255 = vmul.f32 %v191, %v251
    %v256 = vpack.c.bf16 %v253, %v252
    %v257 = vpack.c.bf16 %v255, %v254
    %v258 = vld [vmem:[#allocation9] sm:$0xf]
    %v259 = vld [vmem:[#allocation9 + $0x4] sm:$0xf]
    %v260 = vld [vmem:[#allocation9 + $0x8] sm:$0xf]
    %v261 = vld [vmem:[#allocation9 + $0xc] sm:$0xf]
    %v262 = vld [vmem:[#allocation9 + $0x10] sm:$0xf]
    %v263 = vld [vmem:[#allocation9 + $0x14] sm:$0xf]
    %v264 = vld [vmem:[#allocation9 + $0x18] sm:$0xf]
    %v265 = vld [vmem:[#allocation9 + $0x1c] sm:$0xf]
    %v266 = vld [vmem:[#allocation9 + $0x20] sm:$0xf]
    %v267 = vld [vmem:[#allocation9 + $0x24] sm:$0xf]
    %v268 = vld [vmem:[#allocation9 + $0x28] sm:$0xf]
    %v269 = vld [vmem:[#allocation9 + $0x2c] sm:$0xf]
    %v270 = vld [vmem:[#allocation9 + $0x30] sm:$0xf]
    %v271 = vld [vmem:[#allocation9 + $0x34] sm:$0xf]
    %v272 = vld [vmem:[#allocation9 + $0x38] sm:$0xf]
    %v273 = vld [vmem:[#allocation9 + $0x3c] sm:$0xf]
    %v274 = vld [vmem:[%s5] sm:$0x1]
    %v276 = vperm.slane %v274, 0
    %v294 = vunpack.c.l.b16 %v258
    %v295 = vunpack.c.l.b16 %v259
    %v296 = vunpack.c.l.b16 %v260
    %v297 = vunpack.c.l.b16 %v261
    %v298 = vunpack.c.l.b16 %v262
    %v299 = vunpack.c.l.b16 %v263
    %v300 = vunpack.c.l.b16 %v264
    %v301 = vunpack.c.l.b16 %v265
    %v302 = vunpack.c.l.b16 %v266
    %v303 = vunpack.c.l.b16 %v267
    %v304 = vunpack.c.l.b16 %v268
    %v305 = vunpack.c.l.b16 %v269
    %v306 = vunpack.c.l.b16 %v270
    %v307 = vunpack.c.l.b16 %v271
    %v308 = vunpack.c.l.b16 %v272
    %v309 = vunpack.c.l.b16 %v273
    %v310 = vpack.c.b16 %v295, %v294
    %v311 = vpack.c.b16 %v297, %v296
    %v312 = vpack.c.b16 %v299, %v298
    %v313 = vpack.c.b16 %v301, %v300
    %v314 = vpack.c.b16 %v303, %v302
    %v315 = vpack.c.b16 %v305, %v304
    %v316 = vpack.c.b16 %v307, %v306
    %v317 = vpack.c.b16 %v309, %v308
    %326 = vmatpush.bf16.msra.mxu0 %v317
    %327 = vmatpush.bf16.msra.mxu0 %v316
    %328 = vmatpush.bf16.msra.mxu0 %v315
    %329 = vmatpush.bf16.msra.mxu0 %v314
    %330 = vmatpush.bf16.msra.mxu0 %v313
    %331 = vmatpush.bf16.msra.mxu0 %v312
    %332 = vmatpush.bf16.msra.mxu0 %v311
    %333 = vmatpush.bf16.msra.mxu0 %v310
    %334 = vmatmul.bf16.gmra.mxu0 %v256
    %v335 = vpop.f32.mrf.mxu0
    %v336 = vadd.f32 %v276, %v335
    %v337 = vpop.f32.mrf.mxu0
    %v338 = vadd.f32 %v276, %v337
    %339 = vmatmul.bf16.gmra.mxu0 %v257
    %v340 = vpop.f32.mrf.mxu0
    %v341 = vadd.f32 %v276, %v340
    %v342 = vpop.f32.mrf.mxu0
    %v343 = vadd.f32 %v276, %v342
    %344 = vdwg.mxu0
    %v345 = vmax.f32 %v336, 0.0
    %v346 = vmax.f32 %v338, 0.0
    %v347 = vmax.f32 %v341, 0.0
    %v348 = vmax.f32 %v343, 0.0
    %v349 = vpack.c.bf16 %v346, %v345
    %v350 = vpack.c.bf16 %v348, %v347
    %v351 = vld [vmem:[#allocation11] sm:$0xf]
    %v352 = vld [vmem:[#allocation11 + $0x4] sm:$0xf]
    %v353 = vld [vmem:[#allocation11 + $0x8] sm:$0xf]
    %v354 = vld [vmem:[#allocation11 + $0xc] sm:$0xf]
    %v355 = vld [vmem:[#allocation11 + $0x10] sm:$0xf]
    %v356 = vld [vmem:[#allocation11 + $0x14] sm:$0xf]
    %v357 = vld [vmem:[#allocation11 + $0x18] sm:$0xf]
    %v358 = vld [vmem:[#allocation11 + $0x1c] sm:$0xf]
    %v359 = vld [vmem:[#allocation11 + $0x20] sm:$0xf]
    %v360 = vld [vmem:[#allocation11 + $0x24] sm:$0xf]
    %v361 = vld [vmem:[#allocation11 + $0x28] sm:$0xf]
    %v362 = vld [vmem:[#allocation11 + $0x2c] sm:$0xf]
    %v363 = vld [vmem:[#allocation11 + $0x30] sm:$0xf]
    %v364 = vld [vmem:[#allocation11 + $0x34] sm:$0xf]
    %v365 = vld [vmem:[#allocation11 + $0x38] sm:$0xf]
    %v366 = vld [vmem:[#allocation11 + $0x3c] sm:$0xf]
    %v383 = vunpack.c.l.b16 %v351
    %v384 = vunpack.c.l.b16 %v352
    %v385 = vunpack.c.l.b16 %v353
    %v386 = vunpack.c.l.b16 %v354
    %v387 = vunpack.c.l.b16 %v355
    %v388 = vunpack.c.l.b16 %v356
    %v389 = vunpack.c.l.b16 %v357
    %v390 = vunpack.c.l.b16 %v358
    %v391 = vunpack.c.l.b16 %v359
    %v392 = vunpack.c.l.b16 %v360
    %v393 = vunpack.c.l.b16 %v361
    %v394 = vunpack.c.l.b16 %v362
    %v395 = vunpack.c.l.b16 %v363
    %v396 = vunpack.c.l.b16 %v364
    %v397 = vunpack.c.l.b16 %v365
    %v398 = vunpack.c.l.b16 %v366
    %v399 = vpack.c.b16 %v384, %v383
    %v400 = vpack.c.b16 %v386, %v385
    %v401 = vpack.c.b16 %v388, %v387
    %v402 = vpack.c.b16 %v390, %v389
    %v403 = vpack.c.b16 %v392, %v391
    %v404 = vpack.c.b16 %v394, %v393
    %v405 = vpack.c.b16 %v396, %v395
    %v406 = vpack.c.b16 %v398, %v397
    %415 = vmatpush.bf16.msra.mxu0 %v406
    %416 = vmatpush.bf16.msra.mxu0 %v405
    %417 = vmatpush.bf16.msra.mxu0 %v404
    %418 = vmatpush.bf16.msra.mxu0 %v403
    %419 = vmatpush.bf16.msra.mxu0 %v402
    %420 = vmatpush.bf16.msra.mxu0 %v401
    %421 = vmatpush.bf16.msra.mxu0 %v400
    %422 = vmatpush.bf16.msra.mxu0 %v399
    %423 = vmatmul.bf16.gmra.mxu0 %v349
    %v424 = vpop.f32.mrf.mxu0
    %v425 = vadd.f32 0.0, %v424
    %v426 = vpop.f32.mrf.mxu0
    %v427 = vadd.f32 0.0, %v426
    %428 = vmatmul.bf16.gmra.mxu0 %v350
    %v429 = vpop.f32.mrf.mxu0
    %v430 = vadd.f32 0.0, %v429
    %v431 = vpop.f32.mrf.mxu0
    %v432 = vadd.f32 0.0, %v431
    %433 = vdwg.mxu0
    %v450 = vunpack.c.l.b16 %v119
    %v451 = vunpack.c.l.b16 %v120
    %v452 = vunpack.c.l.b16 %v121
    %v453 = vunpack.c.l.b16 %v122
    %v454 = vunpack.c.l.b16 %v123
    %v455 = vunpack.c.l.b16 %v124
    %v456 = vunpack.c.l.b16 %v125
    %v457 = vunpack.c.l.b16 %v126
    %v458 = vunpack.c.l.b16 %v127
    %v459 = vunpack.c.l.b16 %v128
    %v460 = vunpack.c.l.b16 %v129
    %v461 = vunpack.c.l.b16 %v130
    %v462 = vunpack.c.l.b16 %v131
    %v463 = vunpack.c.l.b16 %v132
    %v464 = vunpack.c.l.b16 %v133
    %v465 = vunpack.c.l.b16 %v134
    %v466 = vpack.c.b16 %v451, %v450
    %v467 = vpack.c.b16 %v453, %v452
    %v468 = vpack.c.b16 %v455, %v454
    %v469 = vpack.c.b16 %v457, %v456
    %v470 = vpack.c.b16 %v459, %v458
    %v471 = vpack.c.b16 %v461, %v460
    %v472 = vpack.c.b16 %v463, %v462
    %v473 = vpack.c.b16 %v465, %v464
    %482 = vmatpush.bf16.msra.mxu0 %v473
    %483 = vmatpush.bf16.msra.mxu0 %v472
    %484 = vmatpush.bf16.msra.mxu0 %v471
    %485 = vmatpush.bf16.msra.mxu0 %v470
    %486 = vmatpush.bf16.msra.mxu0 %v469
    %487 = vmatpush.bf16.msra.mxu0 %v468
    %488 = vmatpush.bf16.msra.mxu0 %v467
    %489 = vmatpush.bf16.msra.mxu0 %v466
    %490 = vmatmul.bf16.gmra.mxu0 %v117
    %v491 = vpop.f32.mrf.mxu0
    %v492 = vadd.f32 %v425, %v491
    %v493 = vpop.f32.mrf.mxu0
    %v494 = vadd.f32 %v427, %v493
    %495 = vmatmul.bf16.gmra.mxu0 %v118
    %v496 = vpop.f32.mrf.mxu0
    %v497 = vadd.f32 %v430, %v496
    %v498 = vpop.f32.mrf.mxu0
    %v499 = vadd.f32 %v432, %v498
    %500 = vdwg.mxu0
    %v501 = vld [vmem:[%s7] sm:$0x1]
    %v503 = vperm.slane %v501, 0
    %v505 = vadd.f32 %v492, %v503
    %v506 = vadd.f32 %v494, %v503
    %v507 = vadd.f32 %v497, %v503
    %v508 = vadd.f32 %v499, %v503
    %509 = vst [vmem:[%s8] sm:$0xff] %v505
    %510 = vst [vmem:[%s8 + $0x8] sm:$0xff] %v506
    %511 = vst [vmem:[%s8 + $0x10] sm:$0xff] %v507
    %512 = vst [vmem:[%s8 + $0x18] sm:$0xff] %v508
    // Predicated region
    $region50: #{re_model_head.1} parent=1 // pred_check
      _
    $region51: #{re_model_head.1} parent=1 // pred_check_branch
      %514 = sbr.rel (0) target = $region53
    $region52: #{re_model_head.1} parent=1 // pred_region
      _
    $region53: #{re_model_head.1} parent=1 // pred_fallthru
      _
    // Predicated region
    $region54: #{re_model_head.1} parent=1 // pred_check
      _
    $region55: #{re_model_head.1} parent=1 // pred_check_branch
      %516 = sbr.rel (0) target = $region57
    $region56: #{re_model_head.1} parent=1 // pred_region
      _
    $region57: #{re_model_head.1} parent=1 // pred_fallthru
      _
    %517 = vsyncpa [#allocation5], 1
    %518 = vsyncpa [#allocation7], 1
    %519 = vsyncpa [#allocation10], 1

</llo_original>
